<compile_context>
chip_gen: v5e
topology: v5e:2x2
jax: 0.10.0
libtpu: 0.0.40
codegen_flags: <defaults>
</compile_context>

<pallas_src>
import jax
import jax.numpy as jnp
from jax.experimental import pallas as pl
from jax.experimental.pallas import tpu as pltpu

_WIDE_LANES = 1024                      # lane-dense tiles -> unmasked full-width vst
_MIN_LANES = 128
_TARGET_TILE_BYTES = 2 * 1024 * 1024    # ~2 MiB/tile; 4 live double-buffered bufs
                                        # (in+out) = 8 MiB -> safe on v5e/v6e/v7x
_VMEM_LIMIT_BYTES = 32 * 1024 * 1024    # explicit scoped-VMEM budget (<= v7x 64 MiB)


def _copy_kernel(x_ref, o_ref):
    # Identity copy of the current (block_rows, lanes) tile.
    o_ref[...] = x_ref[...]


def _pallas_copy_2d(flat2d, block_rows):
    """Tiled identity copy of a 2D (rows, lanes) slab via pallas_call."""
    rows, lanes = flat2d.shape
    assert rows % block_rows == 0 and block_rows % 8 == 0 and lanes % 128 == 0
    grid = (rows // block_rows,)
    return pl.pallas_call(
        _copy_kernel,
        out_shape=jax.ShapeDtypeStruct((rows, lanes), flat2d.dtype),
        grid_spec=pltpu.PrefetchScalarGridSpec(
            num_scalar_prefetch=0,
            grid=grid,
            in_specs=[pl.BlockSpec((block_rows, lanes), lambda i: (i, 0))],
            out_specs=pl.BlockSpec((block_rows, lanes), lambda i: (i, 0)),
        ),
        compiler_params=pltpu.CompilerParams(
            # "parallel" lets v7x shard the row-grid across its 2 TensorCores;
            # neutral on v5e/v6e.
            dimension_semantics=("parallel",),
            vmem_limit_bytes=_VMEM_LIMIT_BYTES,
        ),
        # Let XLA alias the output HBM buffer onto the input buffer when the
        # input is donatable -> the copy can be elided entirely.
        input_output_aliases={0: 0},
    )(flat2d)


def _choose_layout(total, itemsize):
    """Pick (rows, lanes, block_rows) for a lane-dense, (8,128)-aligned slab."""
    lanes = _WIDE_LANES if total >= 8 * _WIDE_LANES else _MIN_LANES
    rows_needed = -(-total // lanes)                  # ceil
    rows_needed = ((rows_needed + 7) // 8) * 8        # round rows up to mult of 8
    block_rows = max(8, (_TARGET_TILE_BYTES // (lanes * itemsize)) // 8 * 8)
    block_rows = min(block_rows, rows_needed)
    rows = -(-rows_needed // block_rows) * block_rows  # rows multiple of block_rows
    return rows, lanes, block_rows


def reshape_forward(x, c, h, w):
    """Equivalent of Reshape(c, h, w).forward(x) == x.view(-1, c, h, w)."""
    total = x.size
    chw = c * h * w
    assert total % chw == 0, "input numel must be divisible by c*h*w"
    n = total // chw

    # NOTE: the zero-cost equivalent of torch's .view is simply
    #     return x.reshape(n, c, h, w)
    # The Pallas identity copy below is kept only because a kernel is required;
    # with input/output aliasing it is as close to free as a kernel can be.

    rows, lanes, block_rows = _choose_layout(total, x.dtype.itemsize)
    padded_total = rows * lanes

    flat = x.reshape(-1)
    if padded_total != total:
        # Pad up to a whole number of aligned tiles (keeps the fast tiled path
        # for awkward sizes); slice the pad off after the copy.
        flat = jnp.pad(flat, (0, padded_total - total))
    flat2d = flat.reshape(rows, lanes)

    out2d = _pallas_copy_2d(flat2d, block_rows)

    out_flat = out2d.reshape(-1)
    if padded_total != total:
        out_flat = out_flat[:total]
    return out_flat.reshape(n, c, h, w)


if __name__ == "__main__":
    # Reshape(c=4, h=16, w=16) applied to a tensor of matching numel:
    # input (2, 1024) -> view(-1, 4, 16, 16) == (2, 4, 16, 16)
    key = jax.random.PRNGKey(0)
    c, h, w = 4, 16, 16
    x = jax.random.normal(key, (2, c * h * w), dtype=jnp.float32)

    out = jax.block_until_ready(reshape_forward(x, c, h, w))

    # Correctness check against the pure-JAX reference of torch's .view.
    ref = x.reshape(-1, c, h, w)
    assert out.shape == (2, c, h, w), out.shape
    assert out.dtype == x.dtype
    assert bool(jnp.array_equal(out, ref))

    print("KERNEL_OK")
</pallas_src>

<mosaic_0001>
module attributes {stable_mosaic.version = 11 : i64} {
  func.func @_copy_kernel(%arg0: i32, %arg1: memref<16x128xf32, #tpu.memory_space<vmem>>, %arg2: memref<16x128xf32, #tpu.memory_space<vmem>>) attributes {dimension_semantics = [#tpu.dimension_semantics<parallel>], iteration_bounds = array<i64: 1>, scalar_prefetch = 0 : i64, scratch_operands = 0 : i64, tpu.core_type = #tpu.core_type<tc>, window_params = [{transform_indices = @transform_0, window_bounds = array<i64: 16, 128>}, {transform_indices = @transform_1, window_bounds = array<i64: 16, 128>}]} {
    %c0 = arith.constant 0 : index
    %c0_0 = arith.constant 0 : index
    %0 = vector.load %arg1[%c0, %c0_0] : memref<16x128xf32, #tpu.memory_space<vmem>>, vector<16x128xf32>
    %c0_1 = arith.constant 0 : index
    %c0_2 = arith.constant 0 : index
    %1 = vector.load %arg2[%c0_1, %c0_2] : memref<16x128xf32, #tpu.memory_space<vmem>>, vector<16x128xf32>
    tpu.vector_store %arg2[%c0_1, %c0_2], %0 {strides = array<i32>} : memref<16x128xf32, #tpu.memory_space<vmem>>, vector<16x128xf32>,
    return
  }
  func.func @transform_0(%arg0: i32) -> (i32, i32) {
    %c0_i32 = arith.constant 0 : i32
    %c0_i32_0 = arith.constant 0 : i32
    return %arg0, %c0_i32 : i32, i32
  }
  func.func @transform_1(%arg0: i32) -> (i32, i32) {
    %c0_i32 = arith.constant 0 : i32
    %c0_i32_0 = arith.constant 0 : i32
    return %arg0, %c0_i32 : i32, i32
  }
}

</mosaic_0001>

<llo_original>
// kernel: tpu_custom_call.1
$region0: #{tpu_custom_call.1}
  #allocation0 [shape = 'u32[]', space=smem, size = 0x4, offset = 0x4, fixed_abs, tag = 'smem constant byte address 0x4 - core index']
  #allocation1 [shape = 'u32[72,128]{1,0:T(1,128)}', space=vmem, size = 0x9000, scoped, tag = 'internal scratch']
  %s0 = inlined_call_operand.hbm [shape: f32[16,128], index: 0, kind: input, shape index: {}, may-alias: {0,1}]
  %s1 = inlined_call_operand.hbm [shape: f32[16,128], index: 1, kind: output, shape index: {}, may-alias: {0,1}]
  %s2 = sld [smem:[#allocation0]]
  $region18: #{tpu_custom_call.1} parent=0
    _
  %s4 = ssub.s32 1, %s2
  %s5 = scalar_select 0, %s4, %s2
  $region1: #{tpu_custom_call.1} parent=0
    #allocation2 [shape = 'u8[8192]{0}', space=vmem, size = 0x2000, scoped, tag = 'input window, operand 0, single buffered']
    #allocation3 [shape = 's32[1]{0}', space=sflag, size = 0x4, scoped, tag = 'scoped memory for tpu_custom_call.1']
    #allocation4 [shape = 's32[1]{0}', space=sflag, size = 0x4, scoped, tag = 'scoped memory for tpu_custom_call.1']
    #allocation5 [shape = 'u8[8192]{0}', space=vmem, size = 0x2000, scoped, tag = 'output window, operand 0, single buffered']
    %6 = vsyncpa [#allocation3], 0
    %7 = vsyncpa [#allocation4], 0
    // Predicated region
    $region2: #{tpu_custom_call.1} parent=1 // pred_check
      _
    $region3: #{tpu_custom_call.1} parent=1 // pred_check_branch
      %9 = sbr.rel (0) target = $region5
    $region4: #{tpu_custom_call.1} parent=1 // pred_region
      %11 = vsyncadd [#allocation3], 0
      %s12 = sshll.u32 %s0, 4
      %s13 = int_to_ptr.hbm [resolvable:$true] %s12
      %s14 = sshll.u32 [#allocation2], 4
      %s15 = int_to_ptr.vmem [resolvable:$true] %s14
      %20 = dma.hbm_to_vmem [thread:$0]  %s13, 256, %s15, [#allocation3], 128, 128, 8
    $region5: #{tpu_custom_call.1} parent=1 // pred_fallthru
      _
    // Predicated region
    $region6: #{tpu_custom_call.1} parent=1 // pred_check
      _
    $region7: #{tpu_custom_call.1} parent=1 // pred_check_branch
      %22 = sbr.rel (0) target = $region9
    $region8: #{tpu_custom_call.1} parent=1 // pred_region
      %24 = dma.done [#allocation3], 256
    $region9: #{tpu_custom_call.1} parent=1 // pred_fallthru
      _
    %v25 = vld [vmem:[#allocation2] sm:$0xff]
    %v26 = vld [vmem:[#allocation2 + $0x8] sm:$0xff]
    %27 = vst [vmem:[#allocation5] sm:$0xff] %v25
    %28 = vst [vmem:[#allocation5 + $0x8] sm:$0xff] %v26
    // Predicated region
    $region10: #{tpu_custom_call.1} parent=1 // pred_check
      _
    $region11: #{tpu_custom_call.1} parent=1 // pred_check_branch
      %30 = sbr.rel (0) target = $region13
    $region12: #{tpu_custom_call.1} parent=1 // pred_region
      %32 = vsyncadd [#allocation4], 0
      %s33 = sshll.u32 [#allocation5], 4
      %s34 = int_to_ptr.vmem [resolvable:$true] %s33
      %s35 = sshll.u32 %s1, 4
      %s36 = int_to_ptr.hbm [resolvable:$true] %s35
      %41 = dma.vmem_to_hbm [thread:$0]  %s34, 256, %s36, [#allocation4], 128, 128, 8
    $region13: #{tpu_custom_call.1} parent=1 // pred_fallthru
      _
    // Predicated region
    $region14: #{tpu_custom_call.1} parent=1 // pred_check
      _
    $region15: #{tpu_custom_call.1} parent=1 // pred_check_branch
      %43 = sbr.rel (0) target = $region17
    $region16: #{tpu_custom_call.1} parent=1 // pred_region
      %45 = dma.done [#allocation4], 256
    $region17: #{tpu_custom_call.1} parent=1 // pred_fallthru
      _
    %46 = vsyncpa [#allocation3], 1
    %47 = vsyncpa [#allocation4], 1

</llo_original>
